<compile_context>
chip_gen: v7x
topology: tpu7x:2x2x1
jax: 0.10.0
libtpu: 0.0.40
codegen_flags: <defaults>
</compile_context>

<pallas_src>
import functools
import math

import jax
import jax.numpy as jnp
from jax.experimental import pallas as pl
from jax.experimental.pallas import tpu as pltpu

NEG_SLOPE = 0.01   # nn.LeakyReLU default negative_slope
LANE = 128         # TPU vreg lane width
SUBLANE = 8        # TPU vreg sublane count (f32)


def _round_up(n, m):
    return ((n + m - 1) // m) * m


def _mlp_kernel(x_ref, p_ref, o_ref, *, segs):
    """Fused MLP.

    p_ref is one (rows, 128) slab holding all padded W_i / b_i; `segs` is a
    tuple of static (w_row0, w_rows, b_row0) offsets. Static ref slices are
    zero-cost views, so unpacking the slab costs nothing at runtime.
    """
    y = x_ref[...]
    n = len(segs)
    for i, (w0, wr, b0) in enumerate(segs):
        w = p_ref[w0:w0 + wr, :]          # (din_p, 128), tile-aligned
        b = p_ref[b0:b0 + 1, :]           # (1, 128), broadcasts over batch
        y = jnp.dot(y, w, preferred_element_type=jnp.float32) + b
        if i < n - 1:
            # LeakyReLU(negative_slope=0.01): one vmul + one vmax on the VPU.
            y = jnp.maximum(y, NEG_SLOPE * y)
    # Dropout(p=0.0) is the identity -> omitted.
    o_ref[...] = y.astype(o_ref.dtype)


def init_mlp_params(key, layer_sizes, bias=True):
    """Deterministic init mimicking PyTorch nn.Linear defaults (uniform +/- 1/sqrt(fan_in)).

    Weights are stored already transposed: (Din, Dout)."""
    params = []
    for din, dout in zip(layer_sizes, layer_sizes[1:]):
        key, kw, kb = jax.random.split(key, 3)
        bound = 1.0 / math.sqrt(din)
        w = jax.random.uniform(kw, (din, dout), jnp.float32, -bound, bound)
        if bias:
            b = jax.random.uniform(kb, (1, dout), jnp.float32, -bound, bound)
        else:
            b = jnp.zeros((1, dout), jnp.float32)
        params.append((w, b))
    return params


def prepare_param_slab(params):
    """Pack all layers into ONE lane-dense (rows, 128) f32 slab.

    Every layer's Dout (including the last) is zero-padded to the 128-lane vreg
    width and every segment (weight block, then an 8-row bias block) starts on
    an (8,128) tile boundary, so:
      * the kernel issues 2 operand DMAs (x + slab) instead of 7,
      * every in-kernel slice is sublane/lane aligned (no relayout copies),
      * the final store is lane-dense; the wrapper slices back to the true Dout.
    Zero padding is mathematically inert through Linear + LeakyReLU (padded bias
    lanes are 0, LeakyReLU(0)=0, padded weight rows are 0).
    """
    segs = []
    blocks = []
    row = 0
    din_p = _round_up(params[0][0].shape[0], SUBLANE)  # layer-0 padded fan-in
    for (w, b) in params:
        din, dout = w.shape
        assert din <= din_p and dout <= LANE
        wr = din_p                                      # rows the kernel reads
        wb = jnp.zeros((wr, LANE), jnp.float32).at[:din, :dout].set(w)
        bb = jnp.zeros((SUBLANE, LANE), jnp.float32).at[0, :dout].set(b.reshape(-1))
        blocks.append(wb)
        blocks.append(bb)
        segs.append((row, wr, row + wr))
        row += wr + SUBLANE
        din_p = LANE                                    # next fan-in = padded Dout
    slab = jnp.concatenate(blocks, axis=0)
    return slab, tuple(segs)


def mlp_forward(x, slab, segs, d_out):
    """Run the whole MLP as a single Pallas call; returns (B, d_out)."""
    B = x.shape[0]
    din_p = segs[0][1]
    if x.shape[1] != din_p:
        # Inert zero-padding of the input features to the padded layer-0 fan-in.
        x = jnp.pad(x, ((0, 0), (0, din_p - x.shape[1])))

    flops = 2 * B * sum(wr * LANE for (_, wr, _) in segs)
    bytes_accessed = 4 * (B * din_p + int(slab.size) + B * LANE)

    kernel = functools.partial(_mlp_kernel, segs=segs)
    out_padded = pl.pallas_call(
        kernel,
        out_shape=jax.ShapeDtypeStruct((B, LANE), x.dtype),
        # No grid: the whole problem (<0.25 MiB) lives in VMEM as single blocks.
        in_specs=[pl.BlockSpec(memory_space=pltpu.MemorySpace.VMEM),
                  pl.BlockSpec(memory_space=pltpu.MemorySpace.VMEM)],
        out_specs=pl.BlockSpec(memory_space=pltpu.MemorySpace.VMEM),
        cost_estimate=pl.CostEstimate(flops=flops, transcendentals=0,
                                      bytes_accessed=bytes_accessed),
    )(x, slab)
    # Lane-dense (B, 128) store in the kernel; cheap wrapper slice back to (B, d_out).
    return out_padded[:, :d_out]


def mlp_reference(x, params):
    """Pure-JAX reference identical to the PyTorch MLP forward."""
    n = len(params)
    for i, (w, b) in enumerate(params):
        x = x @ w + b
        if i < n - 1:
            x = jnp.where(x >= 0, x, NEG_SLOPE * x)
    return x


if __name__ == "__main__":
    key = jax.random.PRNGKey(0)
    k_in, k_par = jax.random.split(key)

    # MLP(l=[32, 64, 64, 16]), batch = 8
    layer_sizes = [32, 64, 64, 16]
    batch = 8

    x = jax.random.normal(k_in, (batch, layer_sizes[0]), jnp.float32)
    params = init_mlp_params(k_par, layer_sizes, bias=True)
    slab, segs = prepare_param_slab(params)

    out = mlp_forward(x, slab, segs, layer_sizes[-1])
    out = jax.block_until_ready(out)

    ref = mlp_reference(x, params)
    assert out.shape == (batch, layer_sizes[-1])
    assert jnp.allclose(out, ref, atol=1e-5, rtol=1e-5)

    print("KERNEL_OK")
</pallas_src>

<mosaic_0001>
module attributes {stable_mosaic.version = 11 : i64} {
  func.func @_mlp_kernel(%arg0: memref<8x32xf32, #tpu.memory_space<vmem>>, %arg1: memref<312x128xf32, #tpu.memory_space<vmem>>, %arg2: memref<8x128xf32, #tpu.memory_space<vmem>>) attributes {dimension_semantics = [], scalar_prefetch = 0 : i64, scratch_operands = 0 : i64, tpu.core_type = #tpu.core_type<tc>} {
    %c0 = arith.constant 0 : index
    %c0_0 = arith.constant 0 : index
    %0 = vector.load %arg0[%c0, %c0_0] : memref<8x32xf32, #tpu.memory_space<vmem>>, vector<8x32xf32>
    %c0_1 = arith.constant 0 : index
    %c0_2 = arith.constant 0 : index
    %1 = vector.load %arg1[%c0_1, %c0_2] : memref<312x128xf32, #tpu.memory_space<vmem>>, vector<32x128xf32>
    %c32 = arith.constant 32 : index
    %c0_3 = arith.constant 0 : index
    %2 = vector.load %arg1[%c32, %c0_3] : memref<312x128xf32, #tpu.memory_space<vmem>>, vector<1x128xf32>
    %cst = arith.constant dense<0.000000e+00> : vector<8x128xf32>
    %3 = tpu.matmul %0, %1, %cst {dimension_numbers = #tpu.dot_dimension_numbers<[1], [0], [0], [1], [0, 0, 1, 1], [], []>} : vector<8x32xf32>, vector<32x128xf32>, vector<8x128xf32> -> vector<8x128xf32>
    %4 = vector.broadcast %2 : vector<1x128xf32> to vector<8x128xf32>
    %5 = arith.addf %3, %4 : vector<8x128xf32>
    %cst_4 = arith.constant 0.00999999977 : f32
    %6 = vector.broadcast %cst_4 : f32 to vector<8x128xf32>
    %7 = arith.mulf %6, %5 : vector<8x128xf32>
    %8 = arith.maximumf %5, %7 : vector<8x128xf32>
    %c40 = arith.constant 40 : index
    %c0_5 = arith.constant 0 : index
    %9 = vector.load %arg1[%c40, %c0_5] : memref<312x128xf32, #tpu.memory_space<vmem>>, vector<128x128xf32>
    %c168 = arith.constant 168 : index
    %c0_6 = arith.constant 0 : index
    %10 = vector.load %arg1[%c168, %c0_6] : memref<312x128xf32, #tpu.memory_space<vmem>>, vector<1x128xf32>
    %cst_7 = arith.constant dense<0.000000e+00> : vector<8x128xf32>
    %11 = tpu.matmul %8, %9, %cst_7 {dimension_numbers = #tpu.dot_dimension_numbers<[1], [0], [0], [1], [0, 0, 1, 1], [], []>} : vector<8x128xf32>, vector<128x128xf32>, vector<8x128xf32> -> vector<8x128xf32>
    %12 = vector.broadcast %10 : vector<1x128xf32> to vector<8x128xf32>
    %13 = arith.addf %11, %12 : vector<8x128xf32>
    %cst_8 = arith.constant 0.00999999977 : f32
    %14 = vector.broadcast %cst_8 : f32 to vector<8x128xf32>
    %15 = arith.mulf %14, %13 : vector<8x128xf32>
    %16 = arith.maximumf %13, %15 : vector<8x128xf32>
    %c176 = arith.constant 176 : index
    %c0_9 = arith.constant 0 : index
    %17 = vector.load %arg1[%c176, %c0_9] : memref<312x128xf32, #tpu.memory_space<vmem>>, vector<128x128xf32>
    %c304 = arith.constant 304 : index
    %c0_10 = arith.constant 0 : index
    %18 = vector.load %arg1[%c304, %c0_10] : memref<312x128xf32, #tpu.memory_space<vmem>>, vector<1x128xf32>
    %cst_11 = arith.constant dense<0.000000e+00> : vector<8x128xf32>
    %19 = tpu.matmul %16, %17, %cst_11 {dimension_numbers = #tpu.dot_dimension_numbers<[1], [0], [0], [1], [0, 0, 1, 1], [], []>} : vector<8x128xf32>, vector<128x128xf32>, vector<8x128xf32> -> vector<8x128xf32>
    %20 = vector.broadcast %18 : vector<1x128xf32> to vector<8x128xf32>
    %21 = arith.addf %19, %20 : vector<8x128xf32>
    %c0_12 = arith.constant 0 : index
    %c0_13 = arith.constant 0 : index
    %22 = vector.load %arg2[%c0_12, %c0_13] : memref<8x128xf32, #tpu.memory_space<vmem>>, vector<8x128xf32>
    tpu.vector_store %arg2[%c0_12, %c0_13], %21 {strides = array<i32>} : memref<8x128xf32, #tpu.memory_space<vmem>>, vector<8x128xf32>,
    return
  }
}

</mosaic_0001>

<llo_original>
// kernel: tpu_custom_call.1
$region0: #{tpu_custom_call.1}
  #allocation0 [shape = 'u32[]', space=smem, size = 0x4, offset = 0x4, fixed_abs, tag = 'smem constant byte address 0x4 - core index']
  #allocation1 [shape = 'u32[144,128]{1,0:T(1,128)}', space=vmem, size = 0x12000, scoped, tag = 'internal scratch']
  %s0 = inlined_call_operand.hbm [shape: f32[8,32], index: 0, kind: input, shape index: {}]
  %s1 = inlined_call_operand.hbm [shape: f32[312,128], index: 1, kind: input, shape index: {}]
  %s2 = inlined_call_operand.hbm [shape: f32[8,128], index: 2, kind: output, shape index: {}]
  %s3 = sld [smem:[#allocation0]]
  $region26: #{tpu_custom_call.1} parent=0
    _
  %s5 = ssub.s32 1, %s3
  %s6 = scalar_select 0, %s5, %s3
  $region1: #{tpu_custom_call.1} parent=0
    #allocation2 [shape = 'u8[4096]{0}', space=vmem, size = 0x1000, scoped, tag = 'input window, operand 0, single buffered']
    #allocation3 [shape = 's32[1]{0}', space=sflag, size = 0x4, scoped, tag = 'scoped memory for tpu_custom_call.1']
    #allocation4 [shape = 's32[1]{0}', space=sflag, size = 0x4, scoped, tag = 'scoped memory for tpu_custom_call.1']
    #allocation5 [shape = 'u8[159744]{0}', space=vmem, size = 0x27000, scoped, tag = 'input window, operand 1, single buffered']
    #allocation6 [shape = 's32[1]{0}', space=sflag, size = 0x4, scoped, tag = 'scoped memory for tpu_custom_call.1']
    #allocation7 [shape = 'u8[4096]{0}', space=vmem, size = 0x1000, scoped, tag = 'output window, operand 0, single buffered']
    %7 = vsyncpa [#allocation3], 0
    %8 = vsyncpa [#allocation6], 0
    %9 = vsyncpa [#allocation4], 0
    // Predicated region
    $region2: #{tpu_custom_call.1} parent=1 // pred_check
      _
    $region3: #{tpu_custom_call.1} parent=1 // pred_check_branch
      %11 = sbr.rel (0) target = $region5
    $region4: #{tpu_custom_call.1} parent=1 // pred_region
      %s13 = ssub.s32 128, 128
      %14 = vsyncadd [#allocation3], %s13
      %s16 = sshll.u32 [#allocation2], 4
      %s17 = int_to_ptr.vmem [resolvable:$true] %s16
      %19 = dma.hbm_to_vmem [thread:$0]  %s0, 128, %s17, [#allocation3]
    $region5: #{tpu_custom_call.1} parent=1 // pred_fallthru
      _
    // Predicated region
    $region6: #{tpu_custom_call.1} parent=1 // pred_check
      _
    $region7: #{tpu_custom_call.1} parent=1 // pred_check_branch
      %21 = sbr.rel (0) target = $region9
    $region8: #{tpu_custom_call.1} parent=1 // pred_region
      %s23 = ssub.s32 4992, 4992
      %24 = vsyncadd [#allocation6], %s23
      %s25 = sshll.u32 [#allocation5], 4
      %s26 = int_to_ptr.vmem [resolvable:$true] %s25
      %31 = dma.hbm_to_vmem [thread:$0]  %s1, 4992, %s26, [#allocation6], 128, 128, 8
    $region9: #{tpu_custom_call.1} parent=1 // pred_fallthru
      _
    // Predicated region
    $region10: #{tpu_custom_call.1} parent=1 // pred_check
      _
    $region11: #{tpu_custom_call.1} parent=1 // pred_check_branch
      %33 = sbr.rel (0) target = $region13
    $region12: #{tpu_custom_call.1} parent=1 // pred_region
      %34 = dma.done [#allocation3], 128
    $region13: #{tpu_custom_call.1} parent=1 // pred_fallthru
      _
    // Predicated region
    $region14: #{tpu_custom_call.1} parent=1 // pred_check
      _
    $region15: #{tpu_custom_call.1} parent=1 // pred_check_branch
      %36 = sbr.rel (0) target = $region17
    $region16: #{tpu_custom_call.1} parent=1 // pred_region
      %37 = dma.done [#allocation6], 4992
    $region17: #{tpu_custom_call.1} parent=1 // pred_fallthru
      _
    %v38 = vld [vmem:[#allocation2] sm:$0xff]
    %v39 = vld [vmem:[#allocation5] sm:$0xff]
    %v40 = vld [vmem:[#allocation5 + $0x8] sm:$0xff]
    %v41 = vld [vmem:[#allocation5 + $0x10] sm:$0xff]
    %v42 = vld [vmem:[#allocation5 + $0x18] sm:$0xff]
    %v43 = vld [vmem:[#allocation5 + $0x20] sm:$0x1]
    %v44 = vlaneseq
    %v45 = vshrl.u32 %v44, 7
    %v46 = vsub.s32 0, %v45
    %v47 = vrot.slane %v43, %v46
    %vm48 = vcmask 261120
    %v50 = vsel %vm48, %v38, 0
    %52 = vmatprep.subr.mxu0 0.0
    %53 = vmatpush1.msra.mxu0 %v39
    %54 = vmatprep.subr.mxu0 0.0
    %55 = vmatpush1.msra.mxu0 %v40
    %56 = vmatprep.subr.mxu0 0.0
    %57 = vmatpush1.msra.mxu0 %v41
    %58 = vmatprep.subr.mxu0 0.0
    %59 = vmatpush1.msra.mxu0 %v42
    %60 = vmatprep.subr.mxu0 0.0
    %61 = vmatpush1.msra.mxu0 0.0
    %62 = vmatprep.subr.mxu0 0.0
    %63 = vmatpush1.msra.mxu0 0.0
    %64 = vmatprep.subr.mxu0 0.0
    %65 = vmatpush1.msra.mxu0 0.0
    %66 = vmatprep.subr.mxu0 0.0
    %67 = vmatpush1.msra.mxu0 0.0
    %68 = vmatprep.subr.mxu0 0.0
    %69 = vmatpush1.msra.mxu0 0.0
    %70 = vmatprep.subr.mxu0 0.0
    %71 = vmatpush1.msra.mxu0 0.0
    %72 = vmatprep.subr.mxu0 0.0
    %73 = vmatpush1.msra.mxu0 0.0
    %74 = vmatprep.subr.mxu0 0.0
    %75 = vmatpush1.msra.mxu0 0.0
    %76 = vmatprep.subr.mxu0 0.0
    %77 = vmatpush1.msra.mxu0 0.0
    %78 = vmatprep.subr.mxu0 0.0
    %79 = vmatpush1.msra.mxu0 0.0
    %80 = vmatprep.subr.mxu0 0.0
    %81 = vmatpush1.msra.mxu0 0.0
    %82 = vmatprep.subr.mxu0 0.0
    %83 = vmatpush1.msra.mxu0 0.0
    %84 = vmatprep.subr.mxu0 0.0
    %85 = vmatpush1.msra.mxu0 0.0
    %86 = vmatprep.subr.mxu0 0.0
    %87 = vmatpush1.msra.mxu0 0.0
    %88 = vmatprep.subr.mxu0 0.0
    %89 = vmatpush1.msra.mxu0 0.0
    %90 = vmatprep.subr.mxu0 0.0
    %91 = vmatpush1.msra.mxu0 0.0
    %92 = vmatprep.subr.mxu0 0.0
    %93 = vmatpush1.msra.mxu0 0.0
    %94 = vmatprep.subr.mxu0 0.0
    %95 = vmatpush1.msra.mxu0 0.0
    %96 = vmatprep.subr.mxu0 0.0
    %97 = vmatpush1.msra.mxu0 0.0
    %98 = vmatprep.subr.mxu0 0.0
    %99 = vmatpush1.msra.mxu0 0.0
    %100 = vmatprep.subr.mxu0 0.0
    %101 = vmatpush1.msra.mxu0 0.0
    %102 = vmatprep.subr.mxu0 0.0
    %103 = vmatpush1.msra.mxu0 0.0
    %104 = vmatprep.subr.mxu0 0.0
    %105 = vmatpush1.msra.mxu0 0.0
    %106 = vmatprep.subr.mxu0 0.0
    %107 = vmatpush1.msra.mxu0 0.0
    %108 = vmatprep.subr.mxu0 0.0
    %109 = vmatpush1.msra.mxu0 0.0
    %110 = vmatprep.subr.mxu0 0.0
    %111 = vmatpush1.msra.mxu0 0.0
    %112 = vmatprep.subr.mxu0 0.0
    %113 = vmatpush1.msra.mxu0 0.0
    %114 = vmatprep.subr.mxu0 0.0
    %115 = vmatpush1.msra.mxu0 0.0
    %116 = vmatprep.mubr.f32.mxu0 0.0
    %117 = vmatmul.mubr.f32.gmra.mrb[0].mxu0 %v50
    %v118 = vpop.f32.mrb[0].mxu0
    %v119 = vadd.f32 %v47, %v118
    %v120 = vpop.f32.mrb[0].mxu0
    %121 = vdwg.mxu0
    %v122 = vmul.f32 %v119, 0.01
    %v123 = vmax.f32 %v119, %v122
    %v124 = vld [vmem:[#allocation5 + $0x28] sm:$0xff]
    %v125 = vld [vmem:[#allocation5 + $0x30] sm:$0xff]
    %v126 = vld [vmem:[#allocation5 + $0x38] sm:$0xff]
    %v127 = vld [vmem:[#allocation5 + $0x40] sm:$0xff]
    %v128 = vld [vmem:[#allocation5 + $0x48] sm:$0xff]
    %v129 = vld [vmem:[#allocation5 + $0x50] sm:$0xff]
    %v130 = vld [vmem:[#allocation5 + $0x58] sm:$0xff]
    %v131 = vld [vmem:[#allocation5 + $0x60] sm:$0xff]
    %v132 = vld [vmem:[#allocation5 + $0x68] sm:$0xff]
    %v133 = vld [vmem:[#allocation5 + $0x70] sm:$0xff]
    %v134 = vld [vmem:[#allocation5 + $0x78] sm:$0xff]
    %v135 = vld [vmem:[#allocation5 + $0x80] sm:$0xff]
    %v136 = vld [vmem:[#allocation5 + $0x88] sm:$0xff]
    %v137 = vld [vmem:[#allocation5 + $0x90] sm:$0xff]
    %v138 = vld [vmem:[#allocation5 + $0x98] sm:$0xff]
    %v139 = vld [vmem:[#allocation5 + $0xa0] sm:$0xff]
    %v140 = vld [vmem:[#allocation5 + $0xa8] sm:$0x1]
    %v141 = vlaneseq
    %v142 = vshrl.u32 %v141, 7
    %v143 = vsub.s32 0, %v142
    %v144 = vrot.slane %v140, %v143
    %145 = vmatprep.subr.mxu0 0.0
    %146 = vmatpush1.msra.mxu0 %v124
    %147 = vmatprep.subr.mxu0 0.0
    %148 = vmatpush1.msra.mxu0 %v125
    %149 = vmatprep.subr.mxu0 0.0
    %150 = vmatpush1.msra.mxu0 %v126
    %151 = vmatprep.subr.mxu0 0.0
    %152 = vmatpush1.msra.mxu0 %v127
    %153 = vmatprep.subr.mxu0 0.0
    %154 = vmatpush1.msra.mxu0 %v128
    %155 = vmatprep.subr.mxu0 0.0
    %156 = vmatpush1.msra.mxu0 %v129
    %157 = vmatprep.subr.mxu0 0.0
    %158 = vmatpush1.msra.mxu0 %v130
    %159 = vmatprep.subr.mxu0 0.0
    %160 = vmatpush1.msra.mxu0 %v131
    %161 = vmatprep.subr.mxu0 0.0
    %162 = vmatpush1.msra.mxu0 %v132
    %163 = vmatprep.subr.mxu0 0.0
    %164 = vmatpush1.msra.mxu0 %v133
    %165 = vmatprep.subr.mxu0 0.0
    %166 = vmatpush1.msra.mxu0 %v134
    %167 = vmatprep.subr.mxu0 0.0
    %168 = vmatpush1.msra.mxu0 %v135
    %169 = vmatprep.subr.mxu0 0.0
    %170 = vmatpush1.msra.mxu0 %v136
    %171 = vmatprep.subr.mxu0 0.0
    %172 = vmatpush1.msra.mxu0 %v137
    %173 = vmatprep.subr.mxu0 0.0
    %174 = vmatpush1.msra.mxu0 %v138
    %175 = vmatprep.subr.mxu0 0.0
    %176 = vmatpush1.msra.mxu0 %v139
    %177 = vmatprep.subr.mxu0 0.0
    %178 = vmatpush1.msra.mxu0 0.0
    %179 = vmatprep.subr.mxu0 0.0
    %180 = vmatpush1.msra.mxu0 0.0
    %181 = vmatprep.subr.mxu0 0.0
    %182 = vmatpush1.msra.mxu0 0.0
    %183 = vmatprep.subr.mxu0 0.0
    %184 = vmatpush1.msra.mxu0 0.0
    %185 = vmatprep.subr.mxu0 0.0
    %186 = vmatpush1.msra.mxu0 0.0
    %187 = vmatprep.subr.mxu0 0.0
    %188 = vmatpush1.msra.mxu0 0.0
    %189 = vmatprep.subr.mxu0 0.0
    %190 = vmatpush1.msra.mxu0 0.0
    %191 = vmatprep.subr.mxu0 0.0
    %192 = vmatpush1.msra.mxu0 0.0
    %193 = vmatprep.subr.mxu0 0.0
    %194 = vmatpush1.msra.mxu0 0.0
    %195 = vmatprep.subr.mxu0 0.0
    %196 = vmatpush1.msra.mxu0 0.0
    %197 = vmatprep.subr.mxu0 0.0
    %198 = vmatpush1.msra.mxu0 0.0
    %199 = vmatprep.subr.mxu0 0.0
    %200 = vmatpush1.msra.mxu0 0.0
    %201 = vmatprep.subr.mxu0 0.0
    %202 = vmatpush1.msra.mxu0 0.0
    %203 = vmatprep.subr.mxu0 0.0
    %204 = vmatpush1.msra.mxu0 0.0
    %205 = vmatprep.subr.mxu0 0.0
    %206 = vmatpush1.msra.mxu0 0.0
    %207 = vmatprep.subr.mxu0 0.0
    %208 = vmatpush1.msra.mxu0 0.0
    %209 = vmatprep.mubr.f32.mxu0 0.0
    %210 = vmatmul.mubr.f32.gmra.mrb[0].mxu0 %v123
    %v211 = vpop.f32.mrb[0].mxu0
    %v212 = vadd.f32 %v144, %v211
    %v213 = vpop.f32.mrb[0].mxu0
    %214 = vdwg.mxu0
    %v215 = vmul.f32 %v212, 0.01
    %v216 = vmax.f32 %v212, %v215
    %v217 = vld [vmem:[#allocation5 + $0xb0] sm:$0xff]
    %v218 = vld [vmem:[#allocation5 + $0xb8] sm:$0xff]
    %v219 = vld [vmem:[#allocation5 + $0xc0] sm:$0xff]
    %v220 = vld [vmem:[#allocation5 + $0xc8] sm:$0xff]
    %v221 = vld [vmem:[#allocation5 + $0xd0] sm:$0xff]
    %v222 = vld [vmem:[#allocation5 + $0xd8] sm:$0xff]
    %v223 = vld [vmem:[#allocation5 + $0xe0] sm:$0xff]
    %v224 = vld [vmem:[#allocation5 + $0xe8] sm:$0xff]
    %v225 = vld [vmem:[#allocation5 + $0xf0] sm:$0xff]
    %v226 = vld [vmem:[#allocation5 + $0xf8] sm:$0xff]
    %v227 = vld [vmem:[#allocation5 + $0x100] sm:$0xff]
    %v228 = vld [vmem:[#allocation5 + $0x108] sm:$0xff]
    %v229 = vld [vmem:[#allocation5 + $0x110] sm:$0xff]
    %v230 = vld [vmem:[#allocation5 + $0x118] sm:$0xff]
    %v231 = vld [vmem:[#allocation5 + $0x120] sm:$0xff]
    %v232 = vld [vmem:[#allocation5 + $0x128] sm:$0xff]
    %v233 = vld [vmem:[#allocation5 + $0x130] sm:$0x1]
    %v234 = vlaneseq
    %v235 = vshrl.u32 %v234, 7
    %v236 = vsub.s32 0, %v235
    %v237 = vrot.slane %v233, %v236
    %238 = vmatprep.subr.mxu0 0.0
    %239 = vmatpush1.msra.mxu0 %v217
    %240 = vmatprep.subr.mxu0 0.0
    %241 = vmatpush1.msra.mxu0 %v218
    %242 = vmatprep.subr.mxu0 0.0
    %243 = vmatpush1.msra.mxu0 %v219
    %244 = vmatprep.subr.mxu0 0.0
    %245 = vmatpush1.msra.mxu0 %v220
    %246 = vmatprep.subr.mxu0 0.0
    %247 = vmatpush1.msra.mxu0 %v221
    %248 = vmatprep.subr.mxu0 0.0
    %249 = vmatpush1.msra.mxu0 %v222
    %250 = vmatprep.subr.mxu0 0.0
    %251 = vmatpush1.msra.mxu0 %v223
    %252 = vmatprep.subr.mxu0 0.0
    %253 = vmatpush1.msra.mxu0 %v224
    %254 = vmatprep.subr.mxu0 0.0
    %255 = vmatpush1.msra.mxu0 %v225
    %256 = vmatprep.subr.mxu0 0.0
    %257 = vmatpush1.msra.mxu0 %v226
    %258 = vmatprep.subr.mxu0 0.0
    %259 = vmatpush1.msra.mxu0 %v227
    %260 = vmatprep.subr.mxu0 0.0
    %261 = vmatpush1.msra.mxu0 %v228
    %262 = vmatprep.subr.mxu0 0.0
    %263 = vmatpush1.msra.mxu0 %v229
    %264 = vmatprep.subr.mxu0 0.0
    %265 = vmatpush1.msra.mxu0 %v230
    %266 = vmatprep.subr.mxu0 0.0
    %267 = vmatpush1.msra.mxu0 %v231
    %268 = vmatprep.subr.mxu0 0.0
    %269 = vmatpush1.msra.mxu0 %v232
    %270 = vmatprep.subr.mxu0 0.0
    %271 = vmatpush1.msra.mxu0 0.0
    %272 = vmatprep.subr.mxu0 0.0
    %273 = vmatpush1.msra.mxu0 0.0
    %274 = vmatprep.subr.mxu0 0.0
    %275 = vmatpush1.msra.mxu0 0.0
    %276 = vmatprep.subr.mxu0 0.0
    %277 = vmatpush1.msra.mxu0 0.0
    %278 = vmatprep.subr.mxu0 0.0
    %279 = vmatpush1.msra.mxu0 0.0
    %280 = vmatprep.subr.mxu0 0.0
    %281 = vmatpush1.msra.mxu0 0.0
    %282 = vmatprep.subr.mxu0 0.0
    %283 = vmatpush1.msra.mxu0 0.0
    %284 = vmatprep.subr.mxu0 0.0
    %285 = vmatpush1.msra.mxu0 0.0
    %286 = vmatprep.subr.mxu0 0.0
    %287 = vmatpush1.msra.mxu0 0.0
    %288 = vmatprep.subr.mxu0 0.0
    %289 = vmatpush1.msra.mxu0 0.0
    %290 = vmatprep.subr.mxu0 0.0
    %291 = vmatpush1.msra.mxu0 0.0
    %292 = vmatprep.subr.mxu0 0.0
    %293 = vmatpush1.msra.mxu0 0.0
    %294 = vmatprep.subr.mxu0 0.0
    %295 = vmatpush1.msra.mxu0 0.0
    %296 = vmatprep.subr.mxu0 0.0
    %297 = vmatpush1.msra.mxu0 0.0
    %298 = vmatprep.subr.mxu0 0.0
    %299 = vmatpush1.msra.mxu0 0.0
    %300 = vmatprep.subr.mxu0 0.0
    %301 = vmatpush1.msra.mxu0 0.0
    %302 = vmatprep.mubr.f32.mxu0 0.0
    %303 = vmatmul.mubr.f32.gmra.mrb[0].mxu0 %v216
    %v304 = vpop.f32.mrb[0].mxu0
    %v305 = vadd.f32 %v237, %v304
    %v306 = vpop.f32.mrb[0].mxu0
    %307 = vdwg.mxu0
    %308 = vst [vmem:[#allocation7] sm:$0xff] %v305
    // Predicated region
    $region18: #{tpu_custom_call.1} parent=1 // pred_check
      _
    $region19: #{tpu_custom_call.1} parent=1 // pred_check_branch
      %310 = sbr.rel (0) target = $region21
    $region20: #{tpu_custom_call.1} parent=1 // pred_region
      %s312 = ssub.s32 128, 128
      %313 = vsyncadd [#allocation4], %s312
      %s315 = sshll.u32 [#allocation7], 4
      %s316 = int_to_ptr.vmem [resolvable:$true] %s315
      %318 = dma.vmem_to_hbm [thread:$0]  %s316, 128, %s2, [#allocation4]
    $region21: #{tpu_custom_call.1} parent=1 // pred_fallthru
      _
    // Predicated region
    $region22: #{tpu_custom_call.1} parent=1 // pred_check
      _
    $region23: #{tpu_custom_call.1} parent=1 // pred_check_branch
      %320 = sbr.rel (0) target = $region25
    $region24: #{tpu_custom_call.1} parent=1 // pred_region
      %321 = dma.done [#allocation4], 128
    $region25: #{tpu_custom_call.1} parent=1 // pred_fallthru
      _
    %322 = vsyncpa [#allocation3], 1
    %323 = vsyncpa [#allocation6], 1
    %324 = vsyncpa [#allocation4], 1

</llo_original>
